<compile_context>
chip_gen: v5e
topology: v5e:2x2
jax: 0.10.0
libtpu: 0.0.40
codegen_flags: <defaults>
</compile_context>

<pallas_src>
import math

import jax
import jax.numpy as jnp
from jax.experimental import pallas as pl
from jax.experimental.pallas import tpu as pltpu


_LANE = 128
_TARGET_STEP_BYTES = 16 * 1024 * 1024       # per-grid-step HBM traffic (in + out)
_VMEM_RESIDENCY_BUDGET = 40 * 1024 * 1024   # double-buffered cap, < v7x 64 MiB VMEM
_MEGACORE_MIN_BYTES = 2 * 1024 * 1024       # only split rows for 2 TCs when worthwhile


def _make_concat_kernel(widths):
    """Kernel that copies each input row-block into its static column slice."""
    offsets = []
    off = 0
    for w in widths:
        offsets.append(off)
        off += w

    def kernel(*refs):
        in_refs = refs[:-1]
        out_ref = refs[-1]
        for r, w, o in zip(in_refs, widths, offsets):
            # w and o are 128-multiples (guaranteed by the wrapper), so this
            # lowers to full unmasked vst.  Dtype promotion is fused here.
            out_ref[:, o:o + w] = r[...].astype(out_ref.dtype)

    return kernel


def concat_pallas(inputs, dim=1):
    """Concatenate tensors along `dim` with a Pallas TPU copy kernel."""
    inputs = [jnp.asarray(x) for x in inputs]
    if not inputs:
        raise ValueError("Concat requires at least one input tensor.")
    if not isinstance(dim, int):
        raise TypeError(f"Only integer concat dims are supported, got {dim!r}")

    ndim = inputs[0].ndim
    if dim < 0:
        dim += ndim
    if not 0 <= dim < ndim:
        raise ValueError(f"dim={dim} is out of range for rank-{ndim} inputs")

    ref_shape = inputs[0].shape
    for x in inputs:
        if x.ndim != ndim:
            raise ValueError("All inputs must have the same rank.")
        for ax in range(ndim):
            if ax != dim and x.shape[ax] != ref_shape[ax]:
                raise ValueError(
                    f"Shape mismatch on axis {ax}: {x.shape} vs {ref_shape}")

    # torch.cat / jnp.concatenate dtype promotion semantics.
    out_dtype = jnp.result_type(*inputs)
    concat_sizes = [x.shape[dim] for x in inputs]
    out_shape = list(ref_shape)
    out_shape[dim] = sum(concat_sizes)
    out_shape = tuple(out_shape)

    lead = int(math.prod(ref_shape[:dim]))
    trail = int(math.prod(ref_shape[dim + 1:]))
    total_width = sum(concat_sizes) * trail

    if lead == 0 or total_width == 0:
        return jnp.zeros(out_shape, out_dtype)
    if len(inputs) == 1:
        return inputs[0].astype(out_dtype)

    # Lane-dense 2-D slabs; drop zero-width inputs (nothing to copy).
    flat = [(x.reshape(lead, c * trail), c * trail)
            for x, c in zip(inputs, concat_sizes) if c * trail > 0]
    if len(flat) == 1:
        return flat[0][0].astype(out_dtype).reshape(out_shape)
    flat_inputs, widths = zip(*flat)
    flat_inputs, widths = list(flat_inputs), list(widths)

    # Lane-alignment guard: unaligned column offsets would hit the masked
    # vst.msk / XLU-rotate store path (measured ~4.5x penalty) -> let XLA do it.
    if any(w % _LANE for w in widths):
        return jnp.concatenate(inputs, axis=dim).astype(out_dtype)

    osz = jnp.dtype(out_dtype).itemsize
    in_row_bytes = sum(w * x.dtype.itemsize for x, w in zip(flat_inputs, widths))
    row_bytes = in_row_bytes + total_width * osz     # HBM traffic per row

    # "Tiny lead, huge row": even a single double-buffered row would not fit
    # the VMEM budget (v7x has only 64 MiB physical).  Fall back.
    if 2 * row_bytes > _VMEM_RESIDENCY_BUDGET:
        return jnp.concatenate(inputs, axis=dim).astype(out_dtype)

    # Dtype-aware sublane rounding: packed sub-32-bit dtypes need 16/32-row
    # multiples to avoid padded vregs / masked edge stores.
    min_isz = min([x.dtype.itemsize for x in flat_inputs] + [osz])
    sub = max(8, 32 // min_isz)

    # Row-block sizing: ~16 MiB of traffic per step amortizes the ~0.35 us
    # per-step pipeline overhead to <5% even at 3.2 TB/s, while the
    # double-buffered residency (~32 MiB) stays under the 40 MiB budget.
    bl = max(1, _TARGET_STEP_BYTES // row_bytes)
    if bl >= lead:
        bl = lead
        # Give the "parallel" row axis >=2 steps so both v7x TensorCores get
        # work once the copy is large enough for the extra step to be noise.
        if lead >= 2 * sub and lead * row_bytes >= _MEGACORE_MIN_BYTES:
            half = -(-lead // 2)
            bl = min(lead, -(-half // sub) * sub)
    elif bl >= sub:
        bl = (bl // sub) * sub          # round DOWN: never exceed the target
    bl = max(1, min(bl, lead))          # never let block_shape exceed the array
    grid = (pl.cdiv(lead, bl),)

    # Scale the scoped-VMEM limit with the actual residency (+ slack), capped
    # well below v7x's 64 MiB physical VMEM.
    vmem_limit = int(min(48 * 1024 * 1024,
                         max(16 * 1024 * 1024, 2 * bl * row_bytes + 8 * 1024 * 1024)))

    kernel = _make_concat_kernel(widths)

    # TODO(synk): if ever called with dozens of very narrow inputs, pre-merge
    # tiny neighbors here so per-step DMA-descriptor issue doesn't dominate.
    in_specs = [pl.BlockSpec((bl, w), lambda r: (r, 0)) for w in widths]
    out_spec = pl.BlockSpec((bl, total_width), lambda r: (r, 0))

    out2d = pl.pallas_call(
        kernel,
        out_shape=jax.ShapeDtypeStruct((lead, total_width), out_dtype),
        grid_spec=pltpu.PrefetchScalarGridSpec(
            num_scalar_prefetch=0,
            grid=grid,
            in_specs=in_specs,
            out_specs=out_spec,
        ),
        compiler_params=pltpu.CompilerParams(
            dimension_semantics=("parallel",),
            vmem_limit_bytes=vmem_limit,
        ),
    )(*flat_inputs)

    return out2d.reshape(out_shape)


class Concat:
    """JAX/Pallas port of torchkit `Concat` plugin layer (torch.cat)."""

    def __init__(self, dim=1):
        self.dim = dim

    def __call__(self, inputs):
        return concat_pallas(inputs, dim=self.dim)


if __name__ == "__main__":
    key = jax.random.PRNGKey(0)
    k1, k2, k3, k4, k5 = jax.random.split(key, 5)

    # NCHW channel concat (default dim=1); widths 4*256 / 3*256 / 5*256 are
    # all 128-multiples -> Pallas path with unmasked lane-dense stores.
    x1 = jax.random.normal(k1, (2, 4, 16, 16), dtype=jnp.float32)
    x2 = jax.random.normal(k2, (2, 3, 16, 16), dtype=jnp.float32)
    x3 = jax.random.normal(k3, (2, 5, 16, 16), dtype=jnp.float32)

    layer = Concat(dim=1)
    out = jax.block_until_ready(layer([x1, x2, x3]))
    ref = jnp.concatenate([x1, x2, x3], axis=1)
    assert out.shape == (2, 12, 16, 16), out.shape
    assert out.dtype == ref.dtype
    assert bool(jnp.allclose(out, ref)), "mismatch vs jnp.concatenate (dim=1)"

    # Mixed dtypes: promotion (bf16 -> f32) now happens inside the kernel.
    x1_bf16 = x1.astype(jnp.bfloat16)
    out_mix = jax.block_until_ready(Concat(dim=1)([x1_bf16, x2]))
    ref_mix = jnp.concatenate([x1_bf16, x2], axis=1)
    assert out_mix.dtype == ref_mix.dtype
    assert bool(jnp.allclose(out_mix, ref_mix)), "mismatch (mixed dtype)"

    # Lane-aligned last-dim concat (widths of 128) -> Pallas path, dim=-1.
    x4 = jax.random.normal(k4, (2, 4, 8, 128), dtype=jnp.float32)
    x5 = jax.random.normal(k5, (2, 4, 8, 128), dtype=jnp.float32)
    out_last = jax.block_until_ready(Concat(dim=-1)([x4, x5]))
    ref_last = jnp.concatenate([x4, x5], axis=-1)
    assert out_last.shape == ref_last.shape
    assert bool(jnp.allclose(out_last, ref_last)), "mismatch (dim=-1, aligned)"

    # Non-128-aligned widths exercise the guarded XLA fallback path.
    out_un = jax.block_until_ready(Concat(dim=-1)([x1, x1]))
    ref_un = jnp.concatenate([x1, x1], axis=-1)
    assert out_un.shape == ref_un.shape
    assert bool(jnp.allclose(out_un, ref_un)), "mismatch (dim=-1, unaligned fallback)"

    print("KERNEL_OK")
</pallas_src>

<mosaic_0001>
module attributes {stable_mosaic.version = 11 : i64} {
  func.func @kernel(%arg0: i32, %arg1: memref<2x1024xf32, #tpu.memory_space<vmem>>, %arg2: memref<2x768xf32, #tpu.memory_space<vmem>>, %arg3: memref<2x1280xf32, #tpu.memory_space<vmem>>, %arg4: memref<2x3072xf32, #tpu.memory_space<vmem>>) attributes {dimension_semantics = [#tpu.dimension_semantics<parallel>], iteration_bounds = array<i64: 1>, scalar_prefetch = 0 : i64, scratch_operands = 0 : i64, tpu.core_type = #tpu.core_type<tc>, window_params = [{transform_indices = @transform_0, window_bounds = array<i64: 2, 1024>}, {transform_indices = @transform_1, window_bounds = array<i64: 2, 768>}, {transform_indices = @transform_2, window_bounds = array<i64: 2, 1280>}, {transform_indices = @transform_3, window_bounds = array<i64: 2, 3072>}]} {
    %c0 = arith.constant 0 : index
    %c0_0 = arith.constant 0 : index
    %0 = vector.load %arg1[%c0, %c0_0] : memref<2x1024xf32, #tpu.memory_space<vmem>>, vector<2x1024xf32>
    %c0_1 = arith.constant 0 : index
    %c0_2 = arith.constant 0 : index
    %1 = vector.load %arg4[%c0_1, %c0_2] : memref<2x3072xf32, #tpu.memory_space<vmem>>, vector<2x1024xf32>
    tpu.vector_store %arg4[%c0_1, %c0_2], %0 {strides = array<i32>} : memref<2x3072xf32, #tpu.memory_space<vmem>>, vector<2x1024xf32>,
    %c0_3 = arith.constant 0 : index
    %c0_4 = arith.constant 0 : index
    %2 = vector.load %arg2[%c0_3, %c0_4] : memref<2x768xf32, #tpu.memory_space<vmem>>, vector<2x768xf32>
    %c0_5 = arith.constant 0 : index
    %c1024 = arith.constant 1024 : index
    %3 = vector.load %arg4[%c0_5, %c1024] : memref<2x3072xf32, #tpu.memory_space<vmem>>, vector<2x768xf32>
    tpu.vector_store %arg4[%c0_5, %c1024], %2 {strides = array<i32>} : memref<2x3072xf32, #tpu.memory_space<vmem>>, vector<2x768xf32>,
    %c0_6 = arith.constant 0 : index
    %c0_7 = arith.constant 0 : index
    %4 = vector.load %arg3[%c0_6, %c0_7] : memref<2x1280xf32, #tpu.memory_space<vmem>>, vector<2x1280xf32>
    %c0_8 = arith.constant 0 : index
    %c1792 = arith.constant 1792 : index
    %5 = vector.load %arg4[%c0_8, %c1792] : memref<2x3072xf32, #tpu.memory_space<vmem>>, vector<2x1280xf32>
    tpu.vector_store %arg4[%c0_8, %c1792], %4 {strides = array<i32>} : memref<2x3072xf32, #tpu.memory_space<vmem>>, vector<2x1280xf32>,
    return
  }
  func.func @transform_0(%arg0: i32) -> (i32, i32) {
    %c0_i32 = arith.constant 0 : i32
    %c0_i32_0 = arith.constant 0 : i32
    return %arg0, %c0_i32 : i32, i32
  }
  func.func @transform_1(%arg0: i32) -> (i32, i32) {
    %c0_i32 = arith.constant 0 : i32
    %c0_i32_0 = arith.constant 0 : i32
    return %arg0, %c0_i32 : i32, i32
  }
  func.func @transform_2(%arg0: i32) -> (i32, i32) {
    %c0_i32 = arith.constant 0 : i32
    %c0_i32_0 = arith.constant 0 : i32
    return %arg0, %c0_i32 : i32, i32
  }
  func.func @transform_3(%arg0: i32) -> (i32, i32) {
    %c0_i32 = arith.constant 0 : i32
    %c0_i32_0 = arith.constant 0 : i32
    return %arg0, %c0_i32 : i32, i32
  }
}

</mosaic_0001>

<llo_original>
// kernel: tpu_custom_call.1
$region0: #{tpu_custom_call.1}
  #allocation0 [shape = 'u32[]', space=smem, size = 0x4, offset = 0x4, fixed_abs, tag = 'smem constant byte address 0x4 - core index']
  #allocation1 [shape = 'u32[72,128]{1,0:T(1,128)}', space=vmem, size = 0x9000, scoped, tag = 'internal scratch']
  %s0 = inlined_call_operand.hbm [shape: f32[2,1024], index: 0, kind: input, shape index: {}]
  %s1 = inlined_call_operand.hbm [shape: f32[2,768], index: 1, kind: input, shape index: {}]
  %s2 = inlined_call_operand.hbm [shape: f32[2,1280], index: 2, kind: input, shape index: {}]
  %s3 = inlined_call_operand.hbm [shape: f32[2,3072], index: 3, kind: output, shape index: {}]
  %s4 = sld [smem:[#allocation0]]
  $region34: #{tpu_custom_call.1} parent=0
    _
  %s6 = ssub.s32 1, %s4
  %s7 = scalar_select 0, %s6, %s4
  $region1: #{tpu_custom_call.1} parent=0
    #allocation2 [shape = 'u8[8192]{0}', space=vmem, size = 0x2000, scoped, tag = 'input window, operand 0, single buffered']
    #allocation3 [shape = 's32[1]{0}', space=sflag, size = 0x4, scoped, tag = 'scoped memory for tpu_custom_call.1']
    #allocation4 [shape = 's32[1]{0}', space=sflag, size = 0x4, scoped, tag = 'scoped memory for tpu_custom_call.1']
    #allocation5 [shape = 'u8[6144]{0}', space=vmem, size = 0x1800, scoped, tag = 'input window, operand 1, single buffered']
    #allocation6 [shape = 's32[1]{0}', space=sflag, size = 0x4, scoped, tag = 'scoped memory for tpu_custom_call.1']
    #allocation7 [shape = 'u8[10240]{0}', space=vmem, size = 0x2800, scoped, tag = 'input window, operand 2, single buffered']
    #allocation8 [shape = 'u8[24576]{0}', space=vmem, size = 0x6000, scoped, tag = 'output window, operand 0, single buffered']
    %8 = vsyncpa [#allocation3], 0
    %9 = vsyncpa [#allocation6], 0
    %10 = vsyncpa [#allocation4], 0
    // Predicated region
    $region2: #{tpu_custom_call.1} parent=1 // pred_check
      _
    $region3: #{tpu_custom_call.1} parent=1 // pred_check_branch
      %12 = sbr.rel (0) target = $region5
    $region4: #{tpu_custom_call.1} parent=1 // pred_region
      %14 = vsyncadd [#allocation3], 0
      %s16 = sshll.u32 %s0, 4
      %s17 = int_to_ptr.hbm [resolvable:$true] %s16
      %s18 = sshll.u32 [#allocation2], 4
      %s19 = int_to_ptr.vmem [resolvable:$true] %s18
      %21 = dma.hbm_to_vmem [thread:$0]  %s17, 256, %s19, [#allocation3]
    $region5: #{tpu_custom_call.1} parent=1 // pred_fallthru
      _
    // Predicated region
    $region6: #{tpu_custom_call.1} parent=1 // pred_check
      _
    $region7: #{tpu_custom_call.1} parent=1 // pred_check_branch
      %23 = sbr.rel (0) target = $region9
    $region8: #{tpu_custom_call.1} parent=1 // pred_region
      %25 = vsyncadd [#allocation6], 0
      %s27 = sshll.u32 %s1, 4
      %s28 = int_to_ptr.hbm [resolvable:$true] %s27
      %s29 = sshll.u32 [#allocation5], 4
      %s30 = int_to_ptr.vmem [resolvable:$true] %s29
      %32 = dma.hbm_to_vmem [thread:$0]  %s28, 192, %s30, [#allocation6]
    $region9: #{tpu_custom_call.1} parent=1 // pred_fallthru
      _
    // Predicated region
    $region10: #{tpu_custom_call.1} parent=1 // pred_check
      _
    $region11: #{tpu_custom_call.1} parent=1 // pred_check_branch
      %34 = sbr.rel (0) target = $region13
    $region12: #{tpu_custom_call.1} parent=1 // pred_region
      %36 = vsyncadd [#allocation6], 0
      %s38 = sshll.u32 %s2, 4
      %s39 = int_to_ptr.hbm [resolvable:$true] %s38
      %s40 = sshll.u32 [#allocation7], 4
      %s41 = int_to_ptr.vmem [resolvable:$true] %s40
      %43 = dma.hbm_to_vmem [thread:$0]  %s39, 320, %s41, [#allocation6]
    $region13: #{tpu_custom_call.1} parent=1 // pred_fallthru
      _
    // Predicated region
    $region14: #{tpu_custom_call.1} parent=1 // pred_check
      _
    $region15: #{tpu_custom_call.1} parent=1 // pred_check_branch
      %45 = sbr.rel (0) target = $region17
    $region16: #{tpu_custom_call.1} parent=1 // pred_region
      %47 = dma.done [#allocation3], 256
    $region17: #{tpu_custom_call.1} parent=1 // pred_fallthru
      _
    // Predicated region
    $region18: #{tpu_custom_call.1} parent=1 // pred_check
      _
    $region19: #{tpu_custom_call.1} parent=1 // pred_check_branch
      %49 = sbr.rel (0) target = $region21
    $region20: #{tpu_custom_call.1} parent=1 // pred_region
      %51 = dma.done [#allocation6], 192
    $region21: #{tpu_custom_call.1} parent=1 // pred_fallthru
      _
    // Predicated region
    $region22: #{tpu_custom_call.1} parent=1 // pred_check
      _
    $region23: #{tpu_custom_call.1} parent=1 // pred_check_branch
      %53 = sbr.rel (0) target = $region25
    $region24: #{tpu_custom_call.1} parent=1 // pred_region
      %55 = dma.done [#allocation6], 320
    $region25: #{tpu_custom_call.1} parent=1 // pred_fallthru
      _
    %v56 = vld [vmem:[#allocation2] sm:$0xff]
    %v57 = vld [vmem:[#allocation2 + $0x8] sm:$0xff]
    %58 = vst [vmem:[#allocation8] sm:$0xff] %v56
    %59 = vst [vmem:[#allocation8 + $0x8] sm:$0xff] %v57
    %v60 = vld [vmem:[#allocation5] sm:$0xff]
    %v61 = vld [vmem:[#allocation5 + $0x8] sm:$0xf]
    %62 = vst [vmem:[#allocation8 + $0x10] sm:$0xff] %v60
    %63 = vst [vmem:[#allocation8 + $0x18] sm:$0xf] %v61
    %v64 = vld [vmem:[#allocation7] sm:$0xff]
    %v65 = vld [vmem:[#allocation7 + $0x8] sm:$0xff]
    %v66 = vld [vmem:[#allocation7 + $0x10] sm:$0xf]
    %67 = vst [vmem:[#allocation8 + $0x1c] sm:$0xff] %v64
    %68 = vst [vmem:[#allocation8 + $0x24] sm:$0xff] %v65
    %69 = vst [vmem:[#allocation8 + $0x2c] sm:$0xf] %v66
    // Predicated region
    $region26: #{tpu_custom_call.1} parent=1 // pred_check
      _
    $region27: #{tpu_custom_call.1} parent=1 // pred_check_branch
      %71 = sbr.rel (0) target = $region29
    $region28: #{tpu_custom_call.1} parent=1 // pred_region
      %73 = vsyncadd [#allocation4], 0
      %s75 = sshll.u32 [#allocation8], 4
      %s76 = int_to_ptr.vmem [resolvable:$true] %s75
      %s77 = sshll.u32 %s3, 4
      %s78 = int_to_ptr.hbm [resolvable:$true] %s77
      %80 = dma.vmem_to_hbm [thread:$0]  %s76, 768, %s78, [#allocation4]
    $region29: #{tpu_custom_call.1} parent=1 // pred_fallthru
      _
    // Predicated region
    $region30: #{tpu_custom_call.1} parent=1 // pred_check
      _
    $region31: #{tpu_custom_call.1} parent=1 // pred_check_branch
      %82 = sbr.rel (0) target = $region33
    $region32: #{tpu_custom_call.1} parent=1 // pred_region
      %84 = dma.done [#allocation4], 768
    $region33: #{tpu_custom_call.1} parent=1 // pred_fallthru
      _
    %85 = vsyncpa [#allocation3], 1
    %86 = vsyncpa [#allocation6], 1
    %87 = vsyncpa [#allocation4], 1

</llo_original>
